<compile_context>
chip_gen: v6e
topology: v6e:2x2x1
jax: 0.10.0
libtpu: 0.0.40
codegen_flags: <defaults>
</compile_context>

<pallas_src>
import functools

import jax
import jax.numpy as jnp
from jax.experimental import pallas as pl
from jax.experimental.pallas import tpu as pltpu


def _round_up(x: int, m: int) -> int:
    return ((x + m - 1) // m) * m


def _cdiv(a: int, b: int) -> int:
    return (a + b - 1) // b


def _sublane_granule(dtype) -> int:
    itemsize = jnp.dtype(dtype).itemsize
    return {4: 8, 2: 16, 1: 32}.get(itemsize, 8)


# ----------------------------- kernels --------------------------------------


def _minout_2d_kernel(x_ref, o_ref, *, arity, group):
    # x_ref: (tb, arity * group) lane-contiguous block; o_ref: (tb, group).
    # group is a multiple of 128 on this path -> all slices are lane-aligned.
    acc = x_ref[:, 0:group]
    for a in range(1, arity):
        acc = jnp.minimum(acc, x_ref[:, a * group:(a + 1) * group])
    o_ref[...] = acc


def _minout_3d_kernel(x_ref, o_ref, *, arity):
    # x_ref: (tb, arity, G) full-extent block; o_ref: (tb, G).
    # Each arity slice starts at lane 0 -> no lane rotates even when G % 128 != 0.
    acc = x_ref[:, 0, :]
    for a in range(1, arity):
        acc = jnp.minimum(acc, x_ref[:, a, :])
    o_ref[...] = acc


def _minout_reduce_kernel(x_ref, o_ref):
    # Grid = (B tiles, G tiles, arity); arity is the last ("arbitrary") axis;
    # the output block is resident across it and used as a min-accumulator.
    a = pl.program_id(2)

    @pl.when(a == 0)
    def _():
        o_ref[...] = x_ref[...]

    @pl.when(a > 0)
    def _():
        o_ref[...] = jnp.minimum(o_ref[...], x_ref[...])


# ----------------------------- tiling helpers -------------------------------


def _choose_tb(B, vmem_row_bytes, hbm_row_bytes, granule, budget):
    """Rows per grid step.

    As large as the VMEM budget allows (no artificial cap), but:
      * keep >= ~2 MiB of HBM traffic per grid step (per-step fixed cost ~0.35us),
      * aim for >= 4 grid steps (>= 2 per TensorCore on dual-core chips),
      * prefer an even step count so the two TCs of a dual-core chip balance.
    """
    b_ceil = _round_up(max(B, 1), granule)
    tb_cap = max(granule,
                 ((budget // max(vmem_row_bytes, 1)) // granule) * granule)
    tb_cap = min(tb_cap, b_ceil)

    tb_floor = _round_up(max(1, (2 * 1024 * 1024) // max(hbm_row_bytes, 1)),
                         granule)
    tb_floor = max(granule, min(tb_floor, tb_cap))

    tb = tb_cap
    if _cdiv(b_ceil, tb) < 4:
        tb_alt = _round_up(_cdiv(b_ceil, 4), granule)
        tb = min(tb, max(tb_floor, tb_alt))

    steps = _cdiv(b_ceil, tb)
    if steps > 1 and steps % 2 == 1:
        tb_even = _round_up(_cdiv(b_ceil, steps + 1), granule)
        if tb_even >= tb_floor and _cdiv(b_ceil, tb_even) % 2 == 0:
            tb = tb_even
    return tb


def _in_spec(block_shape, index_map, buffer_count):
    """Input BlockSpec, optionally asking for >2-deep pipelining (v5e/v6e only)."""
    if buffer_count is not None and buffer_count > 2:
        try:
            return pl.BlockSpec(block_shape, index_map,
                                pipeline_mode=pl.Buffered(buffer_count))
        except Exception:
            pass  # older jax without pipeline_mode / Buffered -> default 2-deep
    return pl.BlockSpec(block_shape, index_map)


# ----------------------------- wrapper ---------------------------------------


def minout(x: jax.Array, arity: int) -> jax.Array:
    """Pallas implementation of MinOut.forward: min over the arity groups."""
    B = x.shape[0]
    flat = x.reshape(B, -1)
    F = flat.shape[1]
    if F % arity != 0:
        raise ValueError("feature dim must be divisible by arity")
    G = F // arity
    dtype = flat.dtype
    itemsize = jnp.dtype(dtype).itemsize
    granule = _sublane_granule(dtype)

    # ---- generation-aware VMEM budget ---------------------------------------
    try:
        vmem_cap = int(pltpu.get_tpu_info().vmem_capacity_bytes)
    except Exception:
        vmem_cap = 64 * 1024 * 1024  # conservative: v7x per-TC size
    budget = min(vmem_cap // 2, 24 * 1024 * 1024)
    vmem_limit = min((vmem_cap * 3) // 4, 96 * 1024 * 1024)

    cost = pl.CostEstimate(
        flops=B * G * max(arity - 1, 1),
        transcendentals=0,
        bytes_accessed=B * (F + G) * itemsize,
    )

    def _params(dims):
        return pltpu.CompilerParams(dimension_semantics=dims,
                                    vmem_limit_bytes=vmem_limit)

    lane_ok = (G % 128 == 0)

    # ---- Path A: 2-D block (tb, F), unrolled lane-aligned minimum -----------
    if lane_ok and granule * 2 * (F + G) * itemsize <= budget:
        in_buffers = 2
        if (vmem_cap >= 100 * 1024 * 1024          # v5e/v6e (128 MiB); not v7x
                and granule * (3 * F + 2 * G) * itemsize <= budget):
            in_buffers = 3
        row_vmem = (in_buffers * F + 2 * G) * itemsize
        tb = _choose_tb(B, row_vmem, (F + G) * itemsize, granule, budget)
        kernel = functools.partial(_minout_2d_kernel, arity=arity, group=G)
        return pl.pallas_call(
            kernel,
            out_shape=jax.ShapeDtypeStruct((B, G), dtype),
            grid_spec=pltpu.PrefetchScalarGridSpec(
                num_scalar_prefetch=0,
                grid=(_cdiv(B, tb),),
                in_specs=[_in_spec((tb, F), lambda i: (i, 0), in_buffers)],
                out_specs=pl.BlockSpec((tb, G), lambda i: (i, 0)),
            ),
            compiler_params=_params(("parallel",)),
            cost_estimate=cost,
        )(flat)

    # ---- Path A3: G not a multiple of 128 -> full-extent (tb, arity, G) -----
    if not lane_ok:
        gp = _round_up(G, 128)              # lane-padded width in VMEM
        ap = _round_up(arity, granule)      # sublane-padded arity in VMEM
        row3_vmem = 2 * (ap * gp + gp) * itemsize   # dbl-buffered in + out
        if granule * row3_vmem <= budget:
            x3 = flat.reshape(B, arity, G)  # contiguous dims: no HBM copy
            tb = _choose_tb(B, row3_vmem, (F + G) * itemsize, granule, budget)
            kernel = functools.partial(_minout_3d_kernel, arity=arity)
            return pl.pallas_call(
                kernel,
                out_shape=jax.ShapeDtypeStruct((B, G), dtype),
                grid_spec=pltpu.PrefetchScalarGridSpec(
                    num_scalar_prefetch=0,
                    grid=(_cdiv(B, tb),),
                    in_specs=[pl.BlockSpec((tb, arity, G),
                                           lambda i: (i, 0, 0))],
                    out_specs=pl.BlockSpec((tb, G), lambda i: (i, 0)),
                ),
                compiler_params=_params(("parallel",)),
                cost_estimate=cost,
            )(x3)

    # ---- Path B: very large F -> grid reduction over arity (last axis) ------
    xb = flat
    Gb = G
    if not lane_ok:
        # Rare huge-F fallback: lane-pad each arity group so feature tiles are
        # lane-dense (keeps the VMEM footprint bounded on v7x).  Padded columns
        # never mix with real ones and are sliced off at the end.
        # TODO(synk): a masked/tiled Path B would avoid this extra HBM copy.
        gp = _round_up(G, 128)
        x3 = flat.reshape(B, arity, G)
        x3 = jnp.pad(x3, ((0, 0), (0, 0), (0, gp - G)))
        xb = x3.reshape(B, arity * gp)
        Gb = gp

    # Largest lane-dense feature tile dividing Gb that keeps the per-step
    # footprint (2x in + 2x out blocks at >= granule rows) inside the budget.
    tg_max = max(128, ((budget // (4 * granule * itemsize)) // 128) * 128)
    tg = 128
    d = 128
    while d <= min(Gb, tg_max):
        if Gb % d == 0:
            tg = d
        d += 128
    n_gt = Gb // tg

    row_vmem = 4 * tg * itemsize  # 2x input block + 2x output block per row
    tb = _choose_tb(B, row_vmem, tg * itemsize, granule, budget)
    out = pl.pallas_call(
        _minout_reduce_kernel,
        out_shape=jax.ShapeDtypeStruct((B, Gb), dtype),
        grid_spec=pltpu.PrefetchScalarGridSpec(
            num_scalar_prefetch=0,
            grid=(_cdiv(B, tb), n_gt, arity),
            in_specs=[pl.BlockSpec((tb, tg),
                                   lambda i, j, a: (i, a * n_gt + j))],
            out_specs=pl.BlockSpec((tb, tg), lambda i, j, a: (i, j)),
        ),
        compiler_params=_params(("parallel", "parallel", "arbitrary")),
        cost_estimate=cost,
    )(xb)
    return out[:, :G] if Gb != G else out


if __name__ == "__main__":
    key = jax.random.PRNGKey(0)
    k1, k2, k3 = jax.random.split(key, 3)

    # Case 1: 4-D input, as the module would see it (view flattens non-batch dims).
    arity = 4
    x = jax.random.normal(k1, (2, 4, 16, 16), dtype=jnp.float32)
    out = jax.block_until_ready(minout(x, arity))
    ref = jnp.min(x.reshape(2, arity, -1), axis=1)
    assert out.shape == ref.shape, (out.shape, ref.shape)
    assert jnp.array_equal(out, ref), "mismatch vs reference (4-D input)"

    # Case 2: 2-D input with lane-dense group width (G = 128).
    x2 = jax.random.normal(k2, (8, 4 * 128), dtype=jnp.float32)
    out2 = jax.block_until_ready(minout(x2, 4))
    ref2 = jnp.min(x2.reshape(8, 4, -1), axis=1)
    assert out2.shape == ref2.shape, (out2.shape, ref2.shape)
    assert jnp.array_equal(out2, ref2), "mismatch vs reference (G=128)"

    # Case 3: non-128-multiple group width (G = 96) + ragged batch
    #         -> 3-D full-extent path with a masked edge block.
    x3 = jax.random.normal(k3, (6, 3 * 96), dtype=jnp.float32)
    out3 = jax.block_until_ready(minout(x3, 3))
    ref3 = jnp.min(x3.reshape(6, 3, -1), axis=1)
    assert out3.shape == ref3.shape, (out3.shape, ref3.shape)
    assert jnp.array_equal(out3, ref3), "mismatch vs reference (G=96, ragged B)"

    print("KERNEL_OK")
</pallas_src>

<mosaic_0001>
module attributes {stable_mosaic.version = 11 : i64} {
  func.func @_minout_2d_kernel(%arg0: i32, %arg1: memref<8x1024xf32, #tpu.memory_space<vmem>>, %arg2: memref<8x256xf32, #tpu.memory_space<vmem>>) attributes {dimension_semantics = [#tpu.dimension_semantics<parallel>], iteration_bounds = array<i64: 1>, scalar_prefetch = 0 : i64, scratch_operands = 0 : i64, tpu.core_type = #tpu.core_type<tc>, window_params = [{transform_indices = @transform_0, window_bounds = array<i64: 8, 1024>}, {transform_indices = @transform_1, window_bounds = array<i64: 8, 256>}]} {
    %c0 = arith.constant 0 : index
    %c0_0 = arith.constant 0 : index
    %0 = vector.load %arg1[%c0, %c0_0] : memref<8x1024xf32, #tpu.memory_space<vmem>>, vector<8x256xf32>
    %c0_1 = arith.constant 0 : index
    %c256 = arith.constant 256 : index
    %1 = vector.load %arg1[%c0_1, %c256] : memref<8x1024xf32, #tpu.memory_space<vmem>>, vector<8x256xf32>
    %2 = arith.minimumf %0, %1 : vector<8x256xf32>
    %c0_2 = arith.constant 0 : index
    %c512 = arith.constant 512 : index
    %3 = vector.load %arg1[%c0_2, %c512] : memref<8x1024xf32, #tpu.memory_space<vmem>>, vector<8x256xf32>
    %4 = arith.minimumf %2, %3 : vector<8x256xf32>
    %c0_3 = arith.constant 0 : index
    %c768 = arith.constant 768 : index
    %5 = vector.load %arg1[%c0_3, %c768] : memref<8x1024xf32, #tpu.memory_space<vmem>>, vector<8x256xf32>
    %6 = arith.minimumf %4, %5 : vector<8x256xf32>
    %c0_4 = arith.constant 0 : index
    %c0_5 = arith.constant 0 : index
    %7 = vector.load %arg2[%c0_4, %c0_5] : memref<8x256xf32, #tpu.memory_space<vmem>>, vector<8x256xf32>
    tpu.vector_store %arg2[%c0_4, %c0_5], %6 {strides = array<i32>} : memref<8x256xf32, #tpu.memory_space<vmem>>, vector<8x256xf32>,
    return
  }
  func.func @transform_0(%arg0: i32) -> (i32, i32) {
    %c0_i32 = arith.constant 0 : i32
    %c0_i32_0 = arith.constant 0 : i32
    return %arg0, %c0_i32 : i32, i32
  }
  func.func @transform_1(%arg0: i32) -> (i32, i32) {
    %c0_i32 = arith.constant 0 : i32
    %c0_i32_0 = arith.constant 0 : i32
    return %arg0, %c0_i32 : i32, i32
  }
}

</mosaic_0001>

<llo_original>
// kernel: tpu_custom_call.1
$region0: #{tpu_custom_call.1}
  #allocation0 [shape = 'u32[]', space=smem, size = 0x4, offset = 0x4, fixed_abs, tag = 'smem constant byte address 0x4 - core index']
  #allocation1 [shape = 'u32[144,128]{1,0:T(1,128)}', space=vmem, size = 0x12000, scoped, tag = 'internal scratch']
  %s0 = inlined_call_operand.hbm [shape: f32[2,1024], index: 0, kind: input, shape index: {}]
  %s1 = inlined_call_operand.hbm [shape: f32[2,256], index: 1, kind: output, shape index: {}]
  %s2 = sld [smem:[#allocation0]]
  $region18: #{tpu_custom_call.1} parent=0
    _
  %s4 = ssub.s32 1, %s2
  %s5 = scalar_select 0, %s4, %s2
  $region1: #{tpu_custom_call.1} parent=0
    #allocation2 [shape = 'u8[32768]{0}', space=vmem, size = 0x8000, scoped, tag = 'input window, operand 0, single buffered']
    #allocation3 [shape = 's32[1]{0}', space=sflag, size = 0x4, scoped, tag = 'scoped memory for tpu_custom_call.1']
    #allocation4 [shape = 's32[1]{0}', space=sflag, size = 0x4, scoped, tag = 'scoped memory for tpu_custom_call.1']
    #allocation5 [shape = 'u8[8192]{0}', space=vmem, size = 0x2000, scoped, tag = 'output window, operand 0, single buffered']
    %6 = vsyncpa [#allocation3], 0
    %7 = vsyncpa [#allocation4], 0
    // Predicated region
    $region2: #{tpu_custom_call.1} parent=1 // pred_check
      _
    $region3: #{tpu_custom_call.1} parent=1 // pred_check_branch
      %9 = sbr.rel (0) target = $region5
    $region4: #{tpu_custom_call.1} parent=1 // pred_region
      %s11 = ssub.s32 1024, 256
      %12 = vsyncadd [#allocation3], %s11
      %s13 = sshll.u32 [#allocation2], 4
      %s14 = int_to_ptr.vmem [resolvable:$true] %s13
      %19 = dma.hbm_to_vmem [thread:$0]  %s0, 256, %s14, [#allocation3], 256, 256, 16
    $region5: #{tpu_custom_call.1} parent=1 // pred_fallthru
      _
    // Predicated region
    $region6: #{tpu_custom_call.1} parent=1 // pred_check
      _
    $region7: #{tpu_custom_call.1} parent=1 // pred_check_branch
      %21 = sbr.rel (0) target = $region9
    $region8: #{tpu_custom_call.1} parent=1 // pred_region
      %22 = dma.done [#allocation3], 1024
    $region9: #{tpu_custom_call.1} parent=1 // pred_fallthru
      _
    %v23 = vld [vmem:[#allocation2] sm:$0xf]
    %v24 = vld [vmem:[#allocation2 + $0x10] sm:$0xf]
    %v25 = vld [vmem:[#allocation2 + $0x20] sm:$0xf]
    %v26 = vld [vmem:[#allocation2 + $0x30] sm:$0xf]
    %v27 = vld [vmem:[#allocation2 + $0x4] sm:$0xf]
    %v28 = vld [vmem:[#allocation2 + $0x14] sm:$0xf]
    %v29 = vld [vmem:[#allocation2 + $0x24] sm:$0xf]
    %v30 = vld [vmem:[#allocation2 + $0x34] sm:$0xf]
    %v31 = vmin.f32 %v23, %v27
    %v32 = vmin.f32 %v24, %v28
    %v33 = vmin.f32 %v25, %v29
    %v34 = vmin.f32 %v26, %v30
    %v35 = vld [vmem:[#allocation2 + $0x8] sm:$0xf]
    %v36 = vld [vmem:[#allocation2 + $0x18] sm:$0xf]
    %v37 = vld [vmem:[#allocation2 + $0x28] sm:$0xf]
    %v38 = vld [vmem:[#allocation2 + $0x38] sm:$0xf]
    %v39 = vmin.f32 %v31, %v35
    %v40 = vmin.f32 %v32, %v36
    %v41 = vmin.f32 %v33, %v37
    %v42 = vmin.f32 %v34, %v38
    %v43 = vld [vmem:[#allocation2 + $0xc] sm:$0xf]
    %v44 = vld [vmem:[#allocation2 + $0x1c] sm:$0xf]
    %v45 = vld [vmem:[#allocation2 + $0x2c] sm:$0xf]
    %v46 = vld [vmem:[#allocation2 + $0x3c] sm:$0xf]
    %v47 = vmin.f32 %v39, %v43
    %v48 = vmin.f32 %v40, %v44
    %v49 = vmin.f32 %v41, %v45
    %v50 = vmin.f32 %v42, %v46
    %51 = vst [vmem:[#allocation5] sm:$0xf] %v47
    %52 = vst [vmem:[#allocation5 + $0x4] sm:$0xf] %v48
    %53 = vst [vmem:[#allocation5 + $0x8] sm:$0xf] %v49
    %54 = vst [vmem:[#allocation5 + $0xc] sm:$0xf] %v50
    // Predicated region
    $region10: #{tpu_custom_call.1} parent=1 // pred_check
      _
    $region11: #{tpu_custom_call.1} parent=1 // pred_check_branch
      %56 = sbr.rel (0) target = $region13
    $region12: #{tpu_custom_call.1} parent=1 // pred_region
      %s58 = ssub.s32 256, 64
      %59 = vsyncadd [#allocation4], %s58
      %s60 = sshll.u32 [#allocation5], 4
      %s61 = int_to_ptr.vmem [resolvable:$true] %s60
      %66 = dma.vmem_to_hbm [thread:$0]  %s61, 64, %s1, [#allocation4], 64, 64, 4
    $region13: #{tpu_custom_call.1} parent=1 // pred_fallthru
      _
    // Predicated region
    $region14: #{tpu_custom_call.1} parent=1 // pred_check
      _
    $region15: #{tpu_custom_call.1} parent=1 // pred_check_branch
      %68 = sbr.rel (0) target = $region17
    $region16: #{tpu_custom_call.1} parent=1 // pred_region
      %69 = dma.done [#allocation4], 256
    $region17: #{tpu_custom_call.1} parent=1 // pred_fallthru
      _
    %70 = vsyncpa [#allocation3], 1
    %71 = vsyncpa [#allocation4], 1

</llo_original>
